<compile_context>
chip_gen: v7x
topology: tpu7x:2x2x1
jax: 0.10.0
libtpu: 0.0.40
codegen_flags: <defaults>
</compile_context>

<pallas_src>
import jax
import jax.numpy as jnp
from jax.experimental import pallas as pl
from jax.experimental.pallas import tpu as pltpu


_LANE = 128
_SUBLANE = 8

# Cached flag: whether pipeline_mode=pl.Buffered(1) is accepted by this JAX.
_USE_SINGLE_BUFFER_WEIGHTS = True


def _round_up(x, m):
    return ((x + m - 1) // m) * m


def _vmem_capacity_bytes():
    try:
        return int(pltpu.get_tpu_info().vmem_capacity_bytes)
    except Exception:
        return 128 * 1024 * 1024  # v5e/v6e default


def _const_spec(shape, single_buffer):
    """Full-array block with a constant index map (resident across grid steps)."""
    index_map = lambda i: (0,) * len(shape)
    if single_buffer:
        return pl.BlockSpec(shape, index_map, pipeline_mode=pl.Buffered(1))
    return pl.BlockSpec(shape, index_map)


def _encoder_kernel(x_ref, w1_ref, b1_ref, w2_ref, b2_ref, wh_ref, bh_ref,
                    out_ref):
    """One row tile of the fused MLP encoder.

    x_ref:   (TM, Din)   bf16 tile of flattened inputs
    w1_ref:  (Din, H)    bf16, resident
    w2_ref:  (H, H)      bf16, resident
    wh_ref:  (H, Lpad)   bf16, fused head weight (w_mu || w_logvar || zero pad)
    b*_ref:  (1, .)      f32 bias rows
    out_ref: (TM, Lpad)  fused lane-dense output slab (mu || logvar || pad)
    """
    x = x_ref[...]                                        # bf16 into the MXU

    # fc1 + ReLU  (f32 accumulate on the MXU, f32 elementwise)
    h = jnp.dot(x, w1_ref[...], preferred_element_type=jnp.float32)
    h = jnp.maximum(h + b1_ref[...], 0.0)

    # fc2 + ReLU
    h = jnp.dot(h.astype(w2_ref.dtype), w2_ref[...],
                preferred_element_type=jnp.float32)
    h = jnp.maximum(h + b2_ref[...], 0.0)

    # fused heads (mu and logvar in one matmul / one lane-dense store)
    out = jnp.dot(h.astype(wh_ref.dtype), wh_ref[...],
                  preferred_element_type=jnp.float32)
    out = out + bh_ref[...]

    out_ref[...] = out.astype(out_ref.dtype)


def _pick_row_tile(M, din, hidden, lpad, cd_bytes, out_bytes, vmem_cap):
    """Row tile derived from a VMEM budget, generation-aware."""
    weight_bytes = cd_bytes * (din * hidden + hidden * hidden + hidden * lpad)
    bias_bytes = 4 * (2 * hidden + lpad)
    budget = int(vmem_cap * 0.55) - weight_bytes - bias_bytes
    per_row = (2 * din * cd_bytes        # double-buffered x tile
               + 2 * lpad * out_bytes    # double-buffered output tile
               + 2 * hidden * 4)         # live f32 intermediate activations
    tm_fit = budget // per_row if per_row > 0 else _SUBLANE
    # v7x (64 MiB VMEM / 2 TensorCores) gets a smaller cap than v5e/v6e.
    is_small_vmem = vmem_cap <= (64 << 20)
    cap = 512 if is_small_vmem else 1024
    tm = min(cap, int(tm_fit))
    if is_small_vmem:
        # Aim for >=4 grid steps (>=2 per core) so DMA overlaps compute per core,
        # but never shrink below 128 rows just to manufacture steps.
        while tm > 128 and -(-M // tm) < 4:
            tm //= 2
    # Never (much) bigger than the whole problem.
    tm = min(tm, _round_up(max(M, 1), _SUBLANE))
    tm = max(_SUBLANE, (tm // _SUBLANE) * _SUBLANE)
    return tm


def _encoder_forward_impl(x, params, compute_dtype, single_buffer):
    *lead, input_dim = x.shape
    M = 1
    for d in lead:
        M *= d
    out_dtype = x.dtype
    cd_bytes = jnp.dtype(compute_dtype).itemsize
    out_bytes = jnp.dtype(out_dtype).itemsize

    x_flat = x.reshape(M, input_dim).astype(compute_dtype)

    hidden_dim = params["w1"].shape[1]
    latent_dim = params["w_mu"].shape[1]
    two_l = 2 * latent_dim
    lpad = _round_up(two_l, _LANE)

    w1 = params["w1"].astype(compute_dtype)
    w2 = params["w2"].astype(compute_dtype)
    b1 = params["b1"].astype(jnp.float32)
    b2 = params["b2"].astype(jnp.float32)
    # Fused head: [hidden, 2L] = w_mu || w_logvar, zero-padded to lpad lanes so
    # the output store is an unmasked full-lane vst.
    w_head = jnp.concatenate([params["w_mu"], params["w_logvar"]],
                             axis=1).astype(compute_dtype)
    b_head = jnp.concatenate([params["b_mu"], params["b_logvar"]],
                             axis=1).astype(jnp.float32)
    if lpad != two_l:
        w_head = jnp.pad(w_head, ((0, 0), (0, lpad - two_l)))
        b_head = jnp.pad(b_head, ((0, 0), (0, lpad - two_l)))

    vmem_cap = _vmem_capacity_bytes()
    tm = _pick_row_tile(M, input_dim, hidden_dim, lpad, cd_bytes, out_bytes,
                        vmem_cap)
    grid = (pl.cdiv(M, tm),)

    weight_bytes = (w1.size + w2.size + w_head.size) * cd_bytes \
        + (b1.size + b2.size + b_head.size) * 4
    per_step_bytes = (2 * tm * input_dim * cd_bytes
                      + 2 * tm * lpad * out_bytes
                      + 2 * tm * hidden_dim * 4)
    vmem_limit = min(int(vmem_cap * 0.9),
                     max(2 * weight_bytes + 2 * per_step_bytes + (8 << 20),
                         32 << 20))

    flops = 2 * M * (input_dim * hidden_dim + hidden_dim * hidden_dim
                     + hidden_dim * lpad)
    bytes_accessed = (M * input_dim * cd_bytes + weight_bytes
                      + M * lpad * out_bytes)

    fused = pl.pallas_call(
        _encoder_kernel,
        out_shape=jax.ShapeDtypeStruct((M, lpad), out_dtype),
        grid_spec=pltpu.PrefetchScalarGridSpec(
            num_scalar_prefetch=0,
            grid=grid,
            in_specs=[
                pl.BlockSpec((tm, input_dim), lambda i: (i, 0)),   # x tile
                _const_spec((input_dim, hidden_dim), single_buffer),   # w1
                _const_spec((1, hidden_dim), single_buffer),           # b1
                _const_spec((hidden_dim, hidden_dim), single_buffer),  # w2
                _const_spec((1, hidden_dim), single_buffer),           # b2
                _const_spec((hidden_dim, lpad), single_buffer),        # w_head
                _const_spec((1, lpad), single_buffer),                 # b_head
            ],
            out_specs=pl.BlockSpec((tm, lpad), lambda i: (i, 0)),
        ),
        compiler_params=pltpu.CompilerParams(
            dimension_semantics=("parallel",),
            vmem_limit_bytes=int(vmem_limit),
        ),
        cost_estimate=pl.CostEstimate(
            flops=int(flops), transcendentals=0,
            bytes_accessed=int(bytes_accessed)),
    )(x_flat, w1, b1, w2, b2, w_head, b_head)

    out_shape = tuple(lead) + (latent_dim,)
    mu = fused[:, :latent_dim].reshape(out_shape)
    logvar = fused[:, latent_dim:two_l].reshape(out_shape)
    return mu, logvar


def encoder_forward(x, params, *, compute_dtype=jnp.bfloat16):
    """Pallas implementation of Encoder.forward.

    x:      [..., input_dim] (any leading dims; flattened internally)
    params: dict with w1,b1,w2,b2,w_mu,b_mu,w_logvar,b_logvar
            (weights stored [in, out], biases stored [1, out])
    returns: (mu, logvar), each [..., latent_dim]
    """
    global _USE_SINGLE_BUFFER_WEIGHTS
    try:
        return _encoder_forward_impl(x, params, compute_dtype,
                                     single_buffer=_USE_SINGLE_BUFFER_WEIGHTS)
    except Exception:
        if not _USE_SINGLE_BUFFER_WEIGHTS:
            raise
        # pipeline_mode=pl.Buffered(1) not supported by this JAX build:
        # fall back (once) to default double-buffered weight blocks.
        _USE_SINGLE_BUFFER_WEIGHTS = False
        return _encoder_forward_impl(x, params, compute_dtype,
                                     single_buffer=False)


def encoder_reference(x, params, compute_dtype=None):
    """Pure-JAX reference. compute_dtype=None mirrors the PyTorch f32 forward;
    compute_dtype=jnp.bfloat16 mirrors the kernel's bf16-operand / f32-accumulate
    MXU arithmetic."""
    def mm(a, w):
        if compute_dtype is None:
            return a @ w
        return jnp.dot(a.astype(compute_dtype), w.astype(compute_dtype),
                       preferred_element_type=jnp.float32)

    h = jax.nn.relu(mm(x, params["w1"]) + params["b1"][0])
    h = jax.nn.relu(mm(h, params["w2"]) + params["b2"][0])
    mu = mm(h, params["w_mu"]) + params["b_mu"][0]
    logvar = mm(h, params["w_logvar"]) + params["b_logvar"][0]
    return mu, logvar


def init_encoder_params(key, input_dim, hidden_dim, latent_dim,
                        dtype=jnp.float32):
    """Deterministic stand-in for the nn.Linear parameter init.
    Weights stored [in, out] (i.e. PyTorch weight.T), biases [1, out]."""
    ks = jax.random.split(key, 8)

    def linear(kw, kb, fan_in, fan_out):
        bound = 1.0 / jnp.sqrt(fan_in)
        w = jax.random.uniform(kw, (fan_in, fan_out), dtype, -bound, bound)
        b = jax.random.uniform(kb, (1, fan_out), dtype, -bound, bound)
        return w, b

    w1, b1 = linear(ks[0], ks[1], input_dim, hidden_dim)
    w2, b2 = linear(ks[2], ks[3], hidden_dim, hidden_dim)
    wmu, bmu = linear(ks[4], ks[5], hidden_dim, latent_dim)
    wlv, blv = linear(ks[6], ks[7], hidden_dim, latent_dim)
    return {"w1": w1, "b1": b1, "w2": w2, "b2": b2,
            "w_mu": wmu, "b_mu": bmu, "w_logvar": wlv, "b_logvar": blv}


if __name__ == "__main__":
    # Small shapes consistent with the module: a batch of sequences of feature
    # vectors fed through the MLP encoder.
    batch, T = 2, 8
    input_dim, hidden_dim, latent_dim = 32, 64, 16

    key = jax.random.PRNGKey(0)
    k_params, k_x = jax.random.split(key)
    params = init_encoder_params(k_params, input_dim, hidden_dim, latent_dim)
    x = jax.random.normal(k_x, (batch, T, input_dim), dtype=jnp.float32)

    mu, logvar = encoder_forward(x, params)
    mu = jax.block_until_ready(mu)
    logvar = jax.block_until_ready(logvar)

    assert mu.shape == (batch, T, latent_dim)
    assert logvar.shape == (batch, T, latent_dim)

    # Tight check vs a reference using the same bf16-operand / f32-accumulate
    # arithmetic as the kernel's MXU path.
    mu_bf, lv_bf = encoder_reference(x, params, compute_dtype=jnp.bfloat16)
    assert jnp.allclose(mu, mu_bf, rtol=5e-3, atol=5e-3), \
        "mu mismatch vs bf16 reference"
    assert jnp.allclose(logvar, lv_bf, rtol=5e-3, atol=5e-3), \
        "logvar mismatch vs bf16 reference"

    # Loose check vs the exact f32 PyTorch-equivalent forward (bf16 rounding).
    mu_f32, lv_f32 = encoder_reference(x, params)
    assert jnp.allclose(mu, mu_f32, rtol=5e-2, atol=5e-2), \
        "mu mismatch vs f32 reference"
    assert jnp.allclose(logvar, lv_f32, rtol=5e-2, atol=5e-2), \
        "logvar mismatch vs f32 reference"

    print("KERNEL_OK")
</pallas_src>

<mosaic_0001>
module attributes {stable_mosaic.version = 11 : i64} {
  func.func @_encoder_kernel(%arg0: i32, %arg1: memref<16x32xbf16, #tpu.memory_space<vmem>>, %arg2: memref<32x64xbf16, #tpu.memory_space<vmem>>, %arg3: memref<1x64xf32, #tpu.memory_space<vmem>>, %arg4: memref<64x64xbf16, #tpu.memory_space<vmem>>, %arg5: memref<1x64xf32, #tpu.memory_space<vmem>>, %arg6: memref<64x128xbf16, #tpu.memory_space<vmem>>, %arg7: memref<1x128xf32, #tpu.memory_space<vmem>>, %arg8: memref<16x128xf32, #tpu.memory_space<vmem>>) attributes {dimension_semantics = [#tpu.dimension_semantics<parallel>], iteration_bounds = array<i64: 1>, scalar_prefetch = 0 : i64, scratch_operands = 0 : i64, tpu.core_type = #tpu.core_type<tc>, window_params = [{transform_indices = @transform_0, window_bounds = array<i64: 16, 32>}, {pipeline_mode = #tpu.pipeline_mode<synchronous>, transform_indices = @transform_1, window_bounds = array<i64: 32, 64>}, {pipeline_mode = #tpu.pipeline_mode<synchronous>, transform_indices = @transform_2, window_bounds = array<i64: 1, 64>}, {pipeline_mode = #tpu.pipeline_mode<synchronous>, transform_indices = @transform_3, window_bounds = array<i64: 64, 64>}, {pipeline_mode = #tpu.pipeline_mode<synchronous>, transform_indices = @transform_4, window_bounds = array<i64: 1, 64>}, {pipeline_mode = #tpu.pipeline_mode<synchronous>, transform_indices = @transform_5, window_bounds = array<i64: 64, 128>}, {pipeline_mode = #tpu.pipeline_mode<synchronous>, transform_indices = @transform_6, window_bounds = array<i64: 1, 128>}, {transform_indices = @transform_7, window_bounds = array<i64: 16, 128>}]} {
    %c0 = arith.constant 0 : index
    %c0_0 = arith.constant 0 : index
    %0 = vector.load %arg1[%c0, %c0_0] : memref<16x32xbf16, #tpu.memory_space<vmem>>, vector<16x32xbf16>
    %c0_1 = arith.constant 0 : index
    %c0_2 = arith.constant 0 : index
    %1 = vector.load %arg2[%c0_1, %c0_2] : memref<32x64xbf16, #tpu.memory_space<vmem>>, vector<32x64xbf16>
    %cst = arith.constant dense<0.000000e+00> : vector<16x64xf32>
    %2 = tpu.matmul %0, %1, %cst {dimension_numbers = #tpu.dot_dimension_numbers<[1], [0], [0], [1], [0, 0, 1, 1], [], []>} : vector<16x32xbf16>, vector<32x64xbf16>, vector<16x64xf32> -> vector<16x64xf32>
    %c0_3 = arith.constant 0 : index
    %c0_4 = arith.constant 0 : index
    %3 = vector.load %arg3[%c0_3, %c0_4] : memref<1x64xf32, #tpu.memory_space<vmem>>, vector<1x64xf32>
    %4 = vector.broadcast %3 : vector<1x64xf32> to vector<16x64xf32>
    %5 = arith.addf %2, %4 : vector<16x64xf32>
    %cst_5 = arith.constant 0.000000e+00 : f32
    %6 = vector.broadcast %cst_5 : f32 to vector<16x64xf32>
    %7 = arith.maximumf %5, %6 : vector<16x64xf32>
    %8 = arith.truncf %7 : vector<16x64xf32> to vector<16x64xbf16>
    %c0_6 = arith.constant 0 : index
    %c0_7 = arith.constant 0 : index
    %9 = vector.load %arg4[%c0_6, %c0_7] : memref<64x64xbf16, #tpu.memory_space<vmem>>, vector<64x64xbf16>
    %cst_8 = arith.constant dense<0.000000e+00> : vector<16x64xf32>
    %10 = tpu.matmul %8, %9, %cst_8 {dimension_numbers = #tpu.dot_dimension_numbers<[1], [0], [0], [1], [0, 0, 1, 1], [], []>} : vector<16x64xbf16>, vector<64x64xbf16>, vector<16x64xf32> -> vector<16x64xf32>
    %c0_9 = arith.constant 0 : index
    %c0_10 = arith.constant 0 : index
    %11 = vector.load %arg5[%c0_9, %c0_10] : memref<1x64xf32, #tpu.memory_space<vmem>>, vector<1x64xf32>
    %12 = vector.broadcast %11 : vector<1x64xf32> to vector<16x64xf32>
    %13 = arith.addf %10, %12 : vector<16x64xf32>
    %cst_11 = arith.constant 0.000000e+00 : f32
    %14 = vector.broadcast %cst_11 : f32 to vector<16x64xf32>
    %15 = arith.maximumf %13, %14 : vector<16x64xf32>
    %16 = arith.truncf %15 : vector<16x64xf32> to vector<16x64xbf16>
    %c0_12 = arith.constant 0 : index
    %c0_13 = arith.constant 0 : index
    %17 = vector.load %arg6[%c0_12, %c0_13] : memref<64x128xbf16, #tpu.memory_space<vmem>>, vector<64x128xbf16>
    %cst_14 = arith.constant dense<0.000000e+00> : vector<16x128xf32>
    %18 = tpu.matmul %16, %17, %cst_14 {dimension_numbers = #tpu.dot_dimension_numbers<[1], [0], [0], [1], [0, 0, 1, 1], [], []>} : vector<16x64xbf16>, vector<64x128xbf16>, vector<16x128xf32> -> vector<16x128xf32>
    %c0_15 = arith.constant 0 : index
    %c0_16 = arith.constant 0 : index
    %19 = vector.load %arg7[%c0_15, %c0_16] : memref<1x128xf32, #tpu.memory_space<vmem>>, vector<1x128xf32>
    %20 = vector.broadcast %19 : vector<1x128xf32> to vector<16x128xf32>
    %21 = arith.addf %18, %20 : vector<16x128xf32>
    %c0_17 = arith.constant 0 : index
    %c0_18 = arith.constant 0 : index
    %22 = vector.load %arg8[%c0_17, %c0_18] : memref<16x128xf32, #tpu.memory_space<vmem>>, vector<16x128xf32>
    tpu.vector_store %arg8[%c0_17, %c0_18], %21 {strides = array<i32>} : memref<16x128xf32, #tpu.memory_space<vmem>>, vector<16x128xf32>,
    return
  }
  func.func @transform_0(%arg0: i32) -> (i32, i32) {
    %c0_i32 = arith.constant 0 : i32
    %c0_i32_0 = arith.constant 0 : i32
    return %arg0, %c0_i32 : i32, i32
  }
  func.func @transform_1(%arg0: i32) -> (i32, i32) {
    %c0_i32 = arith.constant 0 : i32
    %c0_i32_0 = arith.constant 0 : i32
    %c0_i32_1 = arith.constant 0 : i32
    return %c0_i32, %c0_i32_0 : i32, i32
  }
  func.func @transform_2(%arg0: i32) -> (i32, i32) {
    %c0_i32 = arith.constant 0 : i32
    %c0_i32_0 = arith.constant 0 : i32
    %c0_i32_1 = arith.constant 0 : i32
    return %c0_i32, %c0_i32_0 : i32, i32
  }
  func.func @transform_3(%arg0: i32) -> (i32, i32) {
    %c0_i32 = arith.constant 0 : i32
    %c0_i32_0 = arith.constant 0 : i32
    %c0_i32_1 = arith.constant 0 : i32
    return %c0_i32, %c0_i32_0 : i32, i32
  }
  func.func @transform_4(%arg0: i32) -> (i32, i32) {
    %c0_i32 = arith.constant 0 : i32
    %c0_i32_0 = arith.constant 0 : i32
    %c0_i32_1 = arith.constant 0 : i32
    return %c0_i32, %c0_i32_0 : i32, i32
  }
  func.func @transform_5(%arg0: i32) -> (i32, i32) {
    %c0_i32 = arith.constant 0 : i32
    %c0_i32_0 = arith.constant 0 : i32
    %c0_i32_1 = arith.constant 0 : i32
    return %c0_i32, %c0_i32_0 : i32, i32
  }
  func.func @transform_6(%arg0: i32) -> (i32, i32) {
    %c0_i32 = arith.constant 0 : i32
    %c0_i32_0 = arith.constant 0 : i32
    %c0_i32_1 = arith.constant 0 : i32
    return %c0_i32, %c0_i32_0 : i32, i32
  }
  func.func @transform_7(%arg0: i32) -> (i32, i32) {
    %c0_i32 = arith.constant 0 : i32
    %c0_i32_0 = arith.constant 0 : i32
    return %arg0, %c0_i32 : i32, i32
  }
}

module attributes {stable_mosaic.version = 11 : i64} {
  func.func @_encoder_kernel(%arg0: i32, %arg1: memref<16x32xbf16, #tpu.memory_space<vmem>>, %arg2: memref<32x64xbf16, #tpu.memory_space<vmem>>, %arg3: memref<1x64xf32, #tpu.memory_space<vmem>>, %arg4: memref<64x64xbf16, #tpu.memory_space<vmem>>, %arg5: memref<1x64xf32, #tpu.memory_space<vmem>>, %arg6: memref<64x128xbf16, #tpu.memory_space<vmem>>, %arg7: memref<1x128xf32, #tpu.memory_space<vmem>>, %arg8: memref<16x128xf32, #tpu.memory_space<vmem>>) attributes {dimension_semantics = [#tpu.dimension_semantics<parallel>], iteration_bounds = array<i64: 1>, scalar_prefetch = 0 : i64, scratch_operands = 0 : i64, tpu.core_type = #tpu.core_type<tc>, window_params = [{transform_indices = @transform_0, window_bounds = array<i64: 16, 32>}, {pipeline_mode = #tpu.pipeline_mode<synchronous>, transform_indices = @transform_1, window_bounds = array<i64: 32, 64>}, {pipeline_mode = #tpu.pipeline_mode<synchronous>, transform_indices = @transform_2, window_bounds = array<i64: 1, 64>}, {pipeline_mode = #tpu.pipeline_mode<synchronous>, transform_indices = @transform_3, window_bounds = array<i64: 64, 64>}, {pipeline_mode = #tpu.pipeline_mode<synchronous>, transform_indices = @transform_4, window_bounds = array<i64: 1, 64>}, {pipeline_mode = #tpu.pipeline_mode<synchronous>, transform_indices = @transform_5, window_bounds = array<i64: 64, 128>}, {pipeline_mode = #tpu.pipeline_mode<synchronous>, transform_indices = @transform_6, window_bounds = array<i64: 1, 128>}, {transform_indices = @transform_7, window_bounds = array<i64: 16, 128>}]} {
    %c0 = arith.constant 0 : index
    %c0_0 = arith.constant 0 : index
    %0 = vector.load %arg1[%c0, %c0_0] : memref<16x32xbf16, #tpu.memory_space<vmem>>, vector<16x32xbf16>
    %c0_1 = arith.constant 0 : index
    %c0_2 = arith.constant 0 : index
    %1 = vector.load %arg2[%c0_1, %c0_2] : memref<32x64xbf16, #tpu.memory_space<vmem>>, vector<32x64xbf16>
    %cst = arith.constant dense<0.000000e+00> : vector<16x64xf32>
    %2 = tpu.matmul %0, %1, %cst {dimension_numbers = #tpu.dot_dimension_numbers<[1], [0], [0], [1], [0, 0, 1, 1], [], []>} : vector<16x32xbf16>, vector<32x64xbf16>, vector<16x64xf32> -> vector<16x64xf32>
    %c0_3 = arith.constant 0 : index
    %c0_4 = arith.constant 0 : index
    %3 = vector.load %arg3[%c0_3, %c0_4] : memref<1x64xf32, #tpu.memory_space<vmem>>, vector<1x64xf32>
    %4 = vector.broadcast %3 : vector<1x64xf32> to vector<16x64xf32>
    %5 = arith.addf %2, %4 : vector<16x64xf32>
    %cst_5 = arith.constant 0.000000e+00 : f32
    %6 = vector.broadcast %cst_5 : f32 to vector<16x64xf32>
    %7 = arith.maximumf %5, %6 : vector<16x64xf32>
    %8 = arith.truncf %7 : vector<16x64xf32> to vector<16x64xbf16>
    %c0_6 = arith.constant 0 : index
    %c0_7 = arith.constant 0 : index
    %9 = vector.load %arg4[%c0_6, %c0_7] : memref<64x64xbf16, #tpu.memory_space<vmem>>, vector<64x64xbf16>
    %cst_8 = arith.constant dense<0.000000e+00> : vector<16x64xf32>
    %10 = tpu.matmul %8, %9, %cst_8 {dimension_numbers = #tpu.dot_dimension_numbers<[1], [0], [0], [1], [0, 0, 1, 1], [], []>} : vector<16x64xbf16>, vector<64x64xbf16>, vector<16x64xf32> -> vector<16x64xf32>
    %c0_9 = arith.constant 0 : index
    %c0_10 = arith.constant 0 : index
    %11 = vector.load %arg5[%c0_9, %c0_10] : memref<1x64xf32, #tpu.memory_space<vmem>>, vector<1x64xf32>
    %12 = vector.broadcast %11 : vector<1x64xf32> to vector<16x64xf32>
    %13 = arith.addf %10, %12 : vector<16x64xf32>
    %cst_11 = arith.constant 0.000000e+00 : f32
    %14 = vector.broadcast %cst_11 : f32 to vector<16x64xf32>
    %15 = arith.maximumf %13, %14 : vector<16x64xf32>
    %16 = arith.truncf %15 : vector<16x64xf32> to vector<16x64xbf16>
    %c0_12 = arith.constant 0 : index
    %c0_13 = arith.constant 0 : index
    %17 = vector.load %arg6[%c0_12, %c0_13] : memref<64x128xbf16, #tpu.memory_space<vmem>>, vector<64x128xbf16>
    %cst_14 = arith.constant dense<0.000000e+00> : vector<16x128xf32>
    %18 = tpu.matmul %16, %17, %cst_14 {dimension_numbers = #tpu.dot_dimension_numbers<[1], [0], [0], [1], [0, 0, 1, 1], [], []>} : vector<16x64xbf16>, vector<64x128xbf16>, vector<16x128xf32> -> vector<16x128xf32>
    %c0_15 = arith.constant 0 : index
    %c0_16 = arith.constant 0 : index
    %19 = vector.load %arg7[%c0_15, %c0_16] : memref<1x128xf32, #tpu.memory_space<vmem>>, vector<1x128xf32>
    %20 = vector.broadcast %19 : vector<1x128xf32> to vector<16x128xf32>
    %21 = arith.addf %18, %20 : vector<16x128xf32>
    %c0_17 = arith.constant 0 : index
    %c0_18 = arith.constant 0 : index
    %22 = vector.load %arg8[%c0_17, %c0_18] : memref<16x128xf32, #tpu.memory_space<vmem>>, vector<16x128xf32>
    tpu.vector_store %arg8[%c0_17, %c0_18], %21 {strides = array<i32>} : memref<16x128xf32, #tpu.memory_space<vmem>>, vector<16x128xf32>,
    return
  }
  func.func @transform_0(%arg0: i32) -> (i32, i32) {
    %c0_i32 = arith.constant 0 : i32
    %c0_i32_0 = arith.constant 0 : i32
    return %arg0, %c0_i32 : i32, i32
  }
  func.func @transform_1(%arg0: i32) -> (i32, i32) {
    %c0_i32 = arith.constant 0 : i32
    %c0_i32_0 = arith.constant 0 : i32
    %c0_i32_1 = arith.constant 0 : i32
    return %c0_i32, %c0_i32_0 : i32, i32
  }
  func.func @transform_2(%arg0: i32) -> (i32, i32) {
    %c0_i32 = arith.constant 0 : i32
    %c0_i32_0 = arith.constant 0 : i32
    %c0_i32_1 = arith.constant 0 : i32
    return %c0_i32, %c0_i32_0 : i32, i32
  }
  func.func @transform_3(%arg0: i32) -> (i32, i32) {
    %c0_i32 = arith.constant 0 : i32
    %c0_i32_0 = arith.constant 0 : i32
    %c0_i32_1 = arith.constant 0 : i32
    return %c0_i32, %c0_i32_0 : i32, i32
  }
  func.func @transform_4(%arg0: i32) -> (i32, i32) {
    %c0_i32 = arith.constant 0 : i32
    %c0_i32_0 = arith.constant 0 : i32
    %c0_i32_1 = arith.constant 0 : i32
    return %c0_i32, %c0_i32_0 : i32, i32
  }
  func.func @transform_5(%arg0: i32) -> (i32, i32) {
    %c0_i32 = arith.constant 0 : i32
    %c0_i32_0 = arith.constant 0 : i32
    %c0_i32_1 = arith.constant 0 : i32
    return %c0_i32, %c0_i32_0 : i32, i32
  }
  func.func @transform_6(%arg0: i32) -> (i32, i32) {
    %c0_i32 = arith.constant 0 : i32
    %c0_i32_0 = arith.constant 0 : i32
    %c0_i32_1 = arith.constant 0 : i32
    return %c0_i32, %c0_i32_0 : i32, i32
  }
  func.func @transform_7(%arg0: i32) -> (i32, i32) {
    %c0_i32 = arith.constant 0 : i32
    %c0_i32_0 = arith.constant 0 : i32
    return %arg0, %c0_i32 : i32, i32
  }
}

</mosaic_0001>

<llo_original>
// kernel: tpu_custom_call.1
$region0: #{tpu_custom_call.1}
  #allocation0 [shape = 'u32[]', space=smem, size = 0x4, offset = 0x4, fixed_abs, tag = 'smem constant byte address 0x4 - core index']
  #allocation1 [shape = 'u32[144,128]{1,0:T(1,128)}', space=vmem, size = 0x12000, scoped, tag = 'internal scratch']
  %s0 = inlined_call_operand.hbm [shape: bf16[16,32], index: 0, kind: input, shape index: {}]
  %s1 = inlined_call_operand.hbm [shape: bf16[32,64], index: 1, kind: input, shape index: {}]
  %s2 = inlined_call_operand.vmem [shape: f32[1,64], index: 2, kind: input, shape index: {}]
  %s3 = inlined_call_operand.hbm [shape: bf16[64,64], index: 3, kind: input, shape index: {}]
  %s4 = inlined_call_operand.vmem [shape: f32[1,64], index: 4, kind: input, shape index: {}]
  %s5 = inlined_call_operand.hbm [shape: bf16[64,128], index: 5, kind: input, shape index: {}]
  %s6 = inlined_call_operand.vmem [shape: f32[1,128], index: 6, kind: input, shape index: {}]
  %s7 = inlined_call_operand.hbm [shape: f32[16,128], index: 7, kind: output, shape index: {}]
  %s8 = sld [smem:[#allocation0]]
  $region54: #{tpu_custom_call.1} parent=0
    _
  %s10 = ssub.s32 1, %s8
  %s11 = scalar_select 0, %s10, %s8
  $region1: #{tpu_custom_call.1} parent=0
    #allocation2 [shape = 'u8[4096]{0}', space=vmem, size = 0x1000, scoped, tag = 'input window, operand 0, single buffered']
    #allocation3 [shape = 's32[1]{0}', space=sflag, size = 0x4, scoped, tag = 'scoped memory for tpu_custom_call.1']
    #allocation4 [shape = 's32[1]{0}', space=sflag, size = 0x4, scoped, tag = 'scoped memory for tpu_custom_call.1']
    #allocation5 [shape = 'u8[8192]{0}', space=vmem, size = 0x2000, scoped, tag = 'input window, operand 1, single buffered']
    #allocation6 [shape = 's32[1]{0}', space=sflag, size = 0x4, scoped, tag = 'scoped memory for tpu_custom_call.1']
    #allocation7 [shape = 'u8[16384]{0}', space=vmem, size = 0x4000, scoped, tag = 'input window, operand 3, single buffered']
    #allocation8 [shape = 'u8[16384]{0}', space=vmem, size = 0x4000, scoped, tag = 'input window, operand 5, single buffered']
    #allocation9 [shape = 's32[1]{0}', space=sflag, size = 0x4, scoped, tag = 'scoped memory for tpu_custom_call.1']
    #allocation10 [shape = 'u8[8192]{0}', space=vmem, size = 0x2000, scoped, tag = 'output window, operand 0, single buffered']
    %12 = vsyncpa [#allocation3], 0
    %13 = vsyncpa [#allocation6], 0
    %14 = vsyncpa [#allocation9], 0
    %15 = vsyncpa [#allocation4], 0
    // Predicated region
    $region2: #{tpu_custom_call.1} parent=1 // pred_check
      _
    $region3: #{tpu_custom_call.1} parent=1 // pred_check_branch
      %17 = sbr.rel (0) target = $region5
    $region4: #{tpu_custom_call.1} parent=1 // pred_region
      %s19 = ssub.s32 128, 128
      %20 = vsyncadd [#allocation3], %s19
      %s21 = sshll.u32 [#allocation2], 4
      %s22 = int_to_ptr.vmem [resolvable:$true] %s21
      %27 = dma.hbm_to_vmem [thread:$0]  %s0, 128, %s22, [#allocation3], 64, 64, 4
    $region5: #{tpu_custom_call.1} parent=1 // pred_fallthru
      _
    // Predicated region
    $region6: #{tpu_custom_call.1} parent=1 // pred_check
      _
    $region7: #{tpu_custom_call.1} parent=1 // pred_check_branch
      %29 = sbr.rel (0) target = $region9
    $region8: #{tpu_custom_call.1} parent=1 // pred_region
      %s31 = ssub.s32 256, 256
      %32 = vsyncadd [#allocation6], %s31
      %s33 = sshll.u32 [#allocation5], 4
      %s34 = int_to_ptr.vmem [resolvable:$true] %s33
      %39 = dma.hbm_to_vmem [thread:$0]  %s1, 256, %s34, [#allocation6], 64, 64, 4
    $region9: #{tpu_custom_call.1} parent=1 // pred_fallthru
      _
    // Predicated region
    $region10: #{tpu_custom_call.1} parent=1 // pred_check
      _
    $region11: #{tpu_custom_call.1} parent=1 // pred_check_branch
      %41 = sbr.rel (0) target = $region13
    $region12: #{tpu_custom_call.1} parent=1 // pred_region
      _
    $region13: #{tpu_custom_call.1} parent=1 // pred_fallthru
      _
    // Predicated region
    $region14: #{tpu_custom_call.1} parent=1 // pred_check
      _
    $region15: #{tpu_custom_call.1} parent=1 // pred_check_branch
      %43 = sbr.rel (0) target = $region17
    $region16: #{tpu_custom_call.1} parent=1 // pred_region
      %s45 = ssub.s32 512, 512
      %46 = vsyncadd [#allocation6], %s45
      %s47 = sshll.u32 [#allocation7], 4
      %s48 = int_to_ptr.vmem [resolvable:$true] %s47
      %53 = dma.hbm_to_vmem [thread:$0]  %s3, 512, %s48, [#allocation6], 64, 64, 4
    $region17: #{tpu_custom_call.1} parent=1 // pred_fallthru
      _
    // Predicated region
    $region18: #{tpu_custom_call.1} parent=1 // pred_check
      _
    $region19: #{tpu_custom_call.1} parent=1 // pred_check_branch
      %55 = sbr.rel (0) target = $region21
    $region20: #{tpu_custom_call.1} parent=1 // pred_region
      _
    $region21: #{tpu_custom_call.1} parent=1 // pred_fallthru
      _
    // Predicated region
    $region22: #{tpu_custom_call.1} parent=1 // pred_check
      _
    $region23: #{tpu_custom_call.1} parent=1 // pred_check_branch
      %57 = sbr.rel (0) target = $region25
    $region24: #{tpu_custom_call.1} parent=1 // pred_region
      %s59 = ssub.s32 512, 512
      %60 = vsyncadd [#allocation9], %s59
      %s61 = sshll.u32 [#allocation8], 4
      %s62 = int_to_ptr.vmem [resolvable:$true] %s61
      %67 = dma.hbm_to_vmem [thread:$0]  %s5, 512, %s62, [#allocation9], 64, 64, 4
    $region25: #{tpu_custom_call.1} parent=1 // pred_fallthru
      _
    // Predicated region
    $region26: #{tpu_custom_call.1} parent=1 // pred_check
      _
    $region27: #{tpu_custom_call.1} parent=1 // pred_check_branch
      %69 = sbr.rel (0) target = $region29
    $region28: #{tpu_custom_call.1} parent=1 // pred_region
      _
    $region29: #{tpu_custom_call.1} parent=1 // pred_fallthru
      _
    // Predicated region
    $region30: #{tpu_custom_call.1} parent=1 // pred_check
      _
    $region31: #{tpu_custom_call.1} parent=1 // pred_check_branch
      %71 = sbr.rel (0) target = $region33
    $region32: #{tpu_custom_call.1} parent=1 // pred_region
      %72 = dma.done [#allocation3], 128
    $region33: #{tpu_custom_call.1} parent=1 // pred_fallthru
      _
    // Predicated region
    $region34: #{tpu_custom_call.1} parent=1 // pred_check
      _
    $region35: #{tpu_custom_call.1} parent=1 // pred_check_branch
      %74 = sbr.rel (0) target = $region37
    $region36: #{tpu_custom_call.1} parent=1 // pred_region
      %75 = dma.done [#allocation6], 256
    $region37: #{tpu_custom_call.1} parent=1 // pred_fallthru
      _
    // Predicated region
    $region38: #{tpu_custom_call.1} parent=1 // pred_check
      _
    $region39: #{tpu_custom_call.1} parent=1 // pred_check_branch
      %77 = sbr.rel (0) target = $region41
    $region40: #{tpu_custom_call.1} parent=1 // pred_region
      %78 = dma.done [#allocation6], 512
    $region41: #{tpu_custom_call.1} parent=1 // pred_fallthru
      _
    // Predicated region
    $region42: #{tpu_custom_call.1} parent=1 // pred_check
      _
    $region43: #{tpu_custom_call.1} parent=1 // pred_check_branch
      %80 = sbr.rel (0) target = $region45
    $region44: #{tpu_custom_call.1} parent=1 // pred_region
      %81 = dma.done [#allocation9], 512
    $region45: #{tpu_custom_call.1} parent=1 // pred_fallthru
      _
    %v83 = vld [vmem:[#allocation2] sm:$0xf]
    %v84 = vld [vmem:[#allocation2 + $0x4] sm:$0xf]
    %v85 = vld [vmem:[#allocation5] sm:$0xf]
    %v86 = vld [vmem:[#allocation5 + $0x4] sm:$0xf]
    %v87 = vld [vmem:[#allocation5 + $0x8] sm:$0xf]
    %v88 = vld [vmem:[#allocation5 + $0xc] sm:$0xf]
    %v89 = vld [vmem:[%s2] sm:$0x1]
    %v91 = vlaneseq
    %v92 = vshrl.u32 %v91, 7
    %v93 = vsub.s32 0, %v92
    %v94 = vrot.slane %v89, %v93
    %v98 = vunpack.c.l.b16 %v83
    %v99 = vunpack.c.l.b16 %v84
    %v100 = vpack.c.b16 %v99, %v98
    %v105 = vunpack.c.l.b16 %v85
    %v106 = vunpack.c.l.b16 %v86
    %v107 = vunpack.c.l.b16 %v87
    %v108 = vunpack.c.l.b16 %v88
    %v109 = vpack.c.b16 %v106, %v105
    %v110 = vpack.c.b16 %v108, %v107
    %vm113 = vcmask 261120
    %v115 = vsel %vm113, %v100, 0
    %117 = vmatprep.subr.bf16.mxu0 0
    %118 = vmatpush1.bf16.msra.mxu0 %v109
    %119 = vmatprep.subr.bf16.mxu0 0
    %120 = vmatpush1.bf16.msra.mxu0 %v110
    %121 = vmatprep.subr.bf16.mxu0 0
    %122 = vmatpush1.bf16.msra.mxu0 0
    %123 = vmatprep.subr.bf16.mxu0 0
    %124 = vmatpush1.bf16.msra.mxu0 0
    %125 = vmatprep.subr.bf16.mxu0 0
    %126 = vmatpush1.bf16.msra.mxu0 0
    %127 = vmatprep.subr.bf16.mxu0 0
    %128 = vmatpush1.bf16.msra.mxu0 0
    %129 = vmatprep.subr.bf16.mxu0 0
    %130 = vmatpush1.bf16.msra.mxu0 0
    %131 = vmatprep.subr.bf16.mxu0 0
    %132 = vmatpush1.bf16.msra.mxu0 0
    %133 = vmatprep.subr.bf16.mxu0 0
    %134 = vmatpush1.bf16.msra.mxu0 0
    %135 = vmatprep.subr.bf16.mxu0 0
    %136 = vmatpush1.bf16.msra.mxu0 0
    %137 = vmatprep.subr.bf16.mxu0 0
    %138 = vmatpush1.bf16.msra.mxu0 0
    %139 = vmatprep.subr.bf16.mxu0 0
    %140 = vmatpush1.bf16.msra.mxu0 0
    %141 = vmatprep.subr.bf16.mxu0 0
    %142 = vmatpush1.bf16.msra.mxu0 0
    %143 = vmatprep.subr.bf16.mxu0 0
    %144 = vmatpush1.bf16.msra.mxu0 0
    %145 = vmatprep.subr.bf16.mxu0 0
    %146 = vmatpush1.bf16.msra.mxu0 0
    %147 = vmatprep.subr.bf16.mxu0 0
    %148 = vmatpush1.bf16.msra.mxu0 0
    %149 = vmatprep.mubr.bf16.mxu0 0
    %150 = vmatmul.mubr.bf16.gmra.mrb[0].mxu0 %v115
    %v151 = vpop.f32.mrb[0].mxu0
    %v152 = vadd.f32 %v94, %v151
    %v153 = vpop.f32.mrb[0].mxu0
    %v154 = vpop.f32.mrb[0].mxu0
    %v155 = vadd.f32 %v94, %v154
    %v156 = vpop.f32.mrb[0].mxu0
    %157 = vdwg.mxu0
    %v158 = vmax.f32 %v152, 0.0
    %v159 = vmax.f32 %v155, 0.0
    %v160 = vpack.c.bf16 %v159, %v158
    %v161 = vld [vmem:[#allocation7] sm:$0xf]
    %v162 = vld [vmem:[#allocation7 + $0x4] sm:$0xf]
    %v163 = vld [vmem:[#allocation7 + $0x8] sm:$0xf]
    %v164 = vld [vmem:[#allocation7 + $0xc] sm:$0xf]
    %v165 = vld [vmem:[#allocation7 + $0x10] sm:$0xf]
    %v166 = vld [vmem:[#allocation7 + $0x14] sm:$0xf]
    %v167 = vld [vmem:[#allocation7 + $0x18] sm:$0xf]
    %v168 = vld [vmem:[#allocation7 + $0x1c] sm:$0xf]
    %v169 = vld [vmem:[%s4] sm:$0x1]
    %v171 = vlaneseq
    %v172 = vshrl.u32 %v171, 7
    %v173 = vsub.s32 0, %v172
    %v174 = vrot.slane %v169, %v173
    %v184 = vunpack.c.l.b16 %v161
    %v185 = vunpack.c.l.b16 %v162
    %v186 = vunpack.c.l.b16 %v163
    %v187 = vunpack.c.l.b16 %v164
    %v188 = vunpack.c.l.b16 %v165
    %v189 = vunpack.c.l.b16 %v166
    %v190 = vunpack.c.l.b16 %v167
    %v191 = vunpack.c.l.b16 %v168
    %v192 = vpack.c.b16 %v185, %v184
    %v193 = vpack.c.b16 %v187, %v186
    %v194 = vpack.c.b16 %v189, %v188
    %v195 = vpack.c.b16 %v191, %v190
    %vm200 = vcmask 523264
    %v202 = vsel %vm200, %v160, 0
    %204 = vmatprep.subr.bf16.mxu0 0
    %205 = vmatpush1.bf16.msra.mxu0 %v192
    %206 = vmatprep.subr.bf16.mxu0 0
    %207 = vmatpush1.bf16.msra.mxu0 %v193
    %208 = vmatprep.subr.bf16.mxu0 0
    %209 = vmatpush1.bf16.msra.mxu0 %v194
    %210 = vmatprep.subr.bf16.mxu0 0
    %211 = vmatpush1.bf16.msra.mxu0 %v195
    %212 = vmatprep.subr.bf16.mxu0 0
    %213 = vmatpush1.bf16.msra.mxu0 0
    %214 = vmatprep.subr.bf16.mxu0 0
    %215 = vmatpush1.bf16.msra.mxu0 0
    %216 = vmatprep.subr.bf16.mxu0 0
    %217 = vmatpush1.bf16.msra.mxu0 0
    %218 = vmatprep.subr.bf16.mxu0 0
    %219 = vmatpush1.bf16.msra.mxu0 0
    %220 = vmatprep.subr.bf16.mxu0 0
    %221 = vmatpush1.bf16.msra.mxu0 0
    %222 = vmatprep.subr.bf16.mxu0 0
    %223 = vmatpush1.bf16.msra.mxu0 0
    %224 = vmatprep.subr.bf16.mxu0 0
    %225 = vmatpush1.bf16.msra.mxu0 0
    %226 = vmatprep.subr.bf16.mxu0 0
    %227 = vmatpush1.bf16.msra.mxu0 0
    %228 = vmatprep.subr.bf16.mxu0 0
    %229 = vmatpush1.bf16.msra.mxu0 0
    %230 = vmatprep.subr.bf16.mxu0 0
    %231 = vmatpush1.bf16.msra.mxu0 0
    %232 = vmatprep.subr.bf16.mxu0 0
    %233 = vmatpush1.bf16.msra.mxu0 0
    %234 = vmatprep.subr.bf16.mxu0 0
    %235 = vmatpush1.bf16.msra.mxu0 0
    %236 = vmatprep.mubr.bf16.mxu0 0
    %237 = vmatmul.mubr.bf16.gmra.mrb[0].mxu0 %v202
    %v238 = vpop.f32.mrb[0].mxu0
    %v239 = vadd.f32 %v174, %v238
    %v240 = vpop.f32.mrb[0].mxu0
    %v241 = vpop.f32.mrb[0].mxu0
    %v242 = vadd.f32 %v174, %v241
    %v243 = vpop.f32.mrb[0].mxu0
    %244 = vdwg.mxu0
    %v245 = vmax.f32 %v239, 0.0
    %v246 = vmax.f32 %v242, 0.0
    %v247 = vpack.c.bf16 %v246, %v245
    %v248 = vld [vmem:[#allocation8] sm:$0xf]
    %v249 = vld [vmem:[#allocation8 + $0x4] sm:$0xf]
    %v250 = vld [vmem:[#allocation8 + $0x8] sm:$0xf]
    %v251 = vld [vmem:[#allocation8 + $0xc] sm:$0xf]
    %v252 = vld [vmem:[#allocation8 + $0x10] sm:$0xf]
    %v253 = vld [vmem:[#allocation8 + $0x14] sm:$0xf]
    %v254 = vld [vmem:[#allocation8 + $0x18] sm:$0xf]
    %v255 = vld [vmem:[#allocation8 + $0x1c] sm:$0xf]
    %v256 = vld [vmem:[%s6] sm:$0x1]
    %v258 = vlaneseq
    %v259 = vshrl.u32 %v258, 7
    %v260 = vsub.s32 0, %v259
    %v261 = vrot.slane %v256, %v260
    %v271 = vunpack.c.l.b16 %v248
    %v272 = vunpack.c.l.b16 %v249
    %v273 = vunpack.c.l.b16 %v250
    %v274 = vunpack.c.l.b16 %v251
    %v275 = vunpack.c.l.b16 %v252
    %v276 = vunpack.c.l.b16 %v253
    %v277 = vunpack.c.l.b16 %v254
    %v278 = vunpack.c.l.b16 %v255
    %v279 = vpack.c.b16 %v272, %v271
    %v280 = vpack.c.b16 %v274, %v273
    %v281 = vpack.c.b16 %v276, %v275
    %v282 = vpack.c.b16 %v278, %v277
    %v288 = vsel %vm200, %v247, 0
    %290 = vmatprep.subr.bf16.mxu0 0
    %291 = vmatpush1.bf16.msra.mxu0 %v279
    %292 = vmatprep.subr.bf16.mxu0 0
    %293 = vmatpush1.bf16.msra.mxu0 %v280
    %294 = vmatprep.subr.bf16.mxu0 0
    %295 = vmatpush1.bf16.msra.mxu0 %v281
    %296 = vmatprep.subr.bf16.mxu0 0
    %297 = vmatpush1.bf16.msra.mxu0 %v282
    %298 = vmatprep.subr.bf16.mxu0 0
    %299 = vmatpush1.bf16.msra.mxu0 0
    %300 = vmatprep.subr.bf16.mxu0 0
    %301 = vmatpush1.bf16.msra.mxu0 0
    %302 = vmatprep.subr.bf16.mxu0 0
    %303 = vmatpush1.bf16.msra.mxu0 0
    %304 = vmatprep.subr.bf16.mxu0 0
    %305 = vmatpush1.bf16.msra.mxu0 0
    %306 = vmatprep.subr.bf16.mxu0 0
    %307 = vmatpush1.bf16.msra.mxu0 0
    %308 = vmatprep.subr.bf16.mxu0 0
    %309 = vmatpush1.bf16.msra.mxu0 0
    %310 = vmatprep.subr.bf16.mxu0 0
    %311 = vmatpush1.bf16.msra.mxu0 0
    %312 = vmatprep.subr.bf16.mxu0 0
    %313 = vmatpush1.bf16.msra.mxu0 0
    %314 = vmatprep.subr.bf16.mxu0 0
    %315 = vmatpush1.bf16.msra.mxu0 0
    %316 = vmatprep.subr.bf16.mxu0 0
    %317 = vmatpush1.bf16.msra.mxu0 0
    %318 = vmatprep.subr.bf16.mxu0 0
    %319 = vmatpush1.bf16.msra.mxu0 0
    %320 = vmatprep.subr.bf16.mxu0 0
    %321 = vmatpush1.bf16.msra.mxu0 0
    %322 = vmatprep.mubr.bf16.mxu0 0
    %323 = vmatmul.mubr.bf16.gmra.mrb[0].mxu0 %v288
    %v324 = vpop.f32.mrb[0].mxu0
    %v325 = vadd.f32 %v261, %v324
    %v326 = vpop.f32.mrb[0].mxu0
    %v327 = vpop.f32.mrb[0].mxu0
    %v328 = vadd.f32 %v261, %v327
    %v329 = vpop.f32.mrb[0].mxu0
    %330 = vdwg.mxu0
    %331 = vst [vmem:[#allocation10] sm:$0xff] %v325
    %332 = vst [vmem:[#allocation10 + $0x8] sm:$0xff] %v328
    // Predicated region
    $region46: #{tpu_custom_call.1} parent=1 // pred_check
      _
    $region47: #{tpu_custom_call.1} parent=1 // pred_check_branch
      %334 = sbr.rel (0) target = $region49
    $region48: #{tpu_custom_call.1} parent=1 // pred_region
      %s336 = ssub.s32 256, 256
      %337 = vsyncadd [#allocation4], %s336
      %s338 = sshll.u32 [#allocation10], 4
      %s339 = int_to_ptr.vmem [resolvable:$true] %s338
      %344 = dma.vmem_to_hbm [thread:$0]  %s339, 256, %s7, [#allocation4], 128, 128, 8
    $region49: #{tpu_custom_call.1} parent=1 // pred_fallthru
      _
    // Predicated region
    $region50: #{tpu_custom_call.1} parent=1 // pred_check
      _
    $region51: #{tpu_custom_call.1} parent=1 // pred_check_branch
      %346 = sbr.rel (0) target = $region53
    $region52: #{tpu_custom_call.1} parent=1 // pred_region
      %347 = dma.done [#allocation4], 256
    $region53: #{tpu_custom_call.1} parent=1 // pred_fallthru
      _
    %348 = vsyncpa [#allocation3], 1
    %349 = vsyncpa [#allocation6], 1
    %350 = vsyncpa [#allocation9], 1
    %351 = vsyncpa [#allocation4], 1

// kernel: tpu_custom_call.1
$region0: #{tpu_custom_call.1}
  #allocation0 [shape = 'u32[]', space=smem, size = 0x4, offset = 0x4, fixed_abs, tag = 'smem constant byte address 0x4 - core index']
  #allocation1 [shape = 'u32[144,128]{1,0:T(1,128)}', space=vmem, size = 0x12000, scoped, tag = 'internal scratch']
  %s0 = inlined_call_operand.hbm [shape: bf16[16,32], index: 0, kind: input, shape index: {}]
  %s1 = inlined_call_operand.hbm [shape: bf16[32,64], index: 1, kind: input, shape index: {}]
  %s2 = inlined_call_operand.vmem [shape: f32[1,64], index: 2, kind: input, shape index: {}]
  %s3 = inlined_call_operand.hbm [shape: bf16[64,64], index: 3, kind: input, shape index: {}]
  %s4 = inlined_call_operand.vmem [shape: f32[1,64], index: 4, kind: input, shape index: {}]
  %s5 = inlined_call_operand.hbm [shape: bf16[64,128], index: 5, kind: input, shape index: {}]
  %s6 = inlined_call_operand.vmem [shape: f32[1,128], index: 6, kind: input, shape index: {}]
  %s7 = inlined_call_operand.hbm [shape: f32[16,128], index: 7, kind: output, shape index: {}]
  %s8 = sld [smem:[#allocation0]]
  $region54: #{tpu_custom_call.1} parent=0
    _
  %s10 = ssub.s32 1, %s8
  %s11 = scalar_select 0, %s10, %s8
  $region1: #{tpu_custom_call.1} parent=0
    #allocation2 [shape = 'u8[4096]{0}', space=vmem, size = 0x1000, scoped, tag = 'input window, operand 0, single buffered']
    #allocation3 [shape = 's32[1]{0}', space=sflag, size = 0x4, scoped, tag = 'scoped memory for tpu_custom_call.1']
    #allocation4 [shape = 's32[1]{0}', space=sflag, size = 0x4, scoped, tag = 'scoped memory for tpu_custom_call.1']
    #allocation5 [shape = 'u8[8192]{0}', space=vmem, size = 0x2000, scoped, tag = 'input window, operand 1, single buffered']
    #allocation6 [shape = 's32[1]{0}', space=sflag, size = 0x4, scoped, tag = 'scoped memory for tpu_custom_call.1']
    #allocation7 [shape = 'u8[16384]{0}', space=vmem, size = 0x4000, scoped, tag = 'input window, operand 3, single buffered']
    #allocation8 [shape = 'u8[16384]{0}', space=vmem, size = 0x4000, scoped, tag = 'input window, operand 5, single buffered']
    #allocation9 [shape = 's32[1]{0}', space=sflag, size = 0x4, scoped, tag = 'scoped memory for tpu_custom_call.1']
    #allocation10 [shape = 'u8[8192]{0}', space=vmem, size = 0x2000, scoped, tag = 'output window, operand 0, single buffered']
    %12 = vsyncpa [#allocation3], 0
    %13 = vsyncpa [#allocation6], 0
    %14 = vsyncpa [#allocation9], 0
    %15 = vsyncpa [#allocation4], 0
    // Predicated region
    $region2: #{tpu_custom_call.1} parent=1 // pred_check
      _
    $region3: #{tpu_custom_call.1} parent=1 // pred_check_branch
      %17 = sbr.rel (0) target = $region5
    $region4: #{tpu_custom_call.1} parent=1 // pred_region
      %s19 = ssub.s32 128, 128
      %20 = vsyncadd [#allocation3], %s19
      %s21 = sshll.u32 [#allocation2], 4
      %s22 = int_to_ptr.vmem [resolvable:$true] %s21
      %27 = dma.hbm_to_vmem [thread:$0]  %s0, 128, %s22, [#allocation3], 64, 64, 4
    $region5: #{tpu_custom_call.1} parent=1 // pred_fallthru
      _
    // Predicated region
    $region6: #{tpu_custom_call.1} parent=1 // pred_check
      _
    $region7: #{tpu_custom_call.1} parent=1 // pred_check_branch
      %29 = sbr.rel (0) target = $region9
    $region8: #{tpu_custom_call.1} parent=1 // pred_region
      %s31 = ssub.s32 256, 256
      %32 = vsyncadd [#allocation6], %s31
      %s33 = sshll.u32 [#allocation5], 4
      %s34 = int_to_ptr.vmem [resolvable:$true] %s33
      %39 = dma.hbm_to_vmem [thread:$0]  %s1, 256, %s34, [#allocation6], 64, 64, 4
    $region9: #{tpu_custom_call.1} parent=1 // pred_fallthru
      _
    // Predicated region
    $region10: #{tpu_custom_call.1} parent=1 // pred_check
      _
    $region11: #{tpu_custom_call.1} parent=1 // pred_check_branch
      %41 = sbr.rel (0) target = $region13
    $region12: #{tpu_custom_call.1} parent=1 // pred_region
      _
    $region13: #{tpu_custom_call.1} parent=1 // pred_fallthru
      _
    // Predicated region
    $region14: #{tpu_custom_call.1} parent=1 // pred_check
      _
    $region15: #{tpu_custom_call.1} parent=1 // pred_check_branch
      %43 = sbr.rel (0) target = $region17
    $region16: #{tpu_custom_call.1} parent=1 // pred_region
      %s45 = ssub.s32 512, 512
      %46 = vsyncadd [#allocation6], %s45
      %s47 = sshll.u32 [#allocation7], 4
      %s48 = int_to_ptr.vmem [resolvable:$true] %s47
      %53 = dma.hbm_to_vmem [thread:$0]  %s3, 512, %s48, [#allocation6], 64, 64, 4
    $region17: #{tpu_custom_call.1} parent=1 // pred_fallthru
      _
    // Predicated region
    $region18: #{tpu_custom_call.1} parent=1 // pred_check
      _
    $region19: #{tpu_custom_call.1} parent=1 // pred_check_branch
      %55 = sbr.rel (0) target = $region21
    $region20: #{tpu_custom_call.1} parent=1 // pred_region
      _
    $region21: #{tpu_custom_call.1} parent=1 // pred_fallthru
      _
    // Predicated region
    $region22: #{tpu_custom_call.1} parent=1 // pred_check
      _
    $region23: #{tpu_custom_call.1} parent=1 // pred_check_branch
      %57 = sbr.rel (0) target = $region25
    $region24: #{tpu_custom_call.1} parent=1 // pred_region
      %s59 = ssub.s32 512, 512
      %60 = vsyncadd [#allocation9], %s59
      %s61 = sshll.u32 [#allocation8], 4
      %s62 = int_to_ptr.vmem [resolvable:$true] %s61
      %67 = dma.hbm_to_vmem [thread:$0]  %s5, 512, %s62, [#allocation9], 64, 64, 4
    $region25: #{tpu_custom_call.1} parent=1 // pred_fallthru
      _
    // Predicated region
    $region26: #{tpu_custom_call.1} parent=1 // pred_check
      _
    $region27: #{tpu_custom_call.1} parent=1 // pred_check_branch
      %69 = sbr.rel (0) target = $region29
    $region28: #{tpu_custom_call.1} parent=1 // pred_region
      _
    $region29: #{tpu_custom_call.1} parent=1 // pred_fallthru
      _
    // Predicated region
    $region30: #{tpu_custom_call.1} parent=1 // pred_check
      _
    $region31: #{tpu_custom_call.1} parent=1 // pred_check_branch
      %71 = sbr.rel (0) target = $region33
    $region32: #{tpu_custom_call.1} parent=1 // pred_region
      %72 = dma.done [#allocation3], 128
    $region33: #{tpu_custom_call.1} parent=1 // pred_fallthru
      _
    // Predicated region
    $region34: #{tpu_custom_call.1} parent=1 // pred_check
      _
    $region35: #{tpu_custom_call.1} parent=1 // pred_check_branch
      %74 = sbr.rel (0) target = $region37
    $region36: #{tpu_custom_call.1} parent=1 // pred_region
      %75 = dma.done [#allocation6], 256
    $region37: #{tpu_custom_call.1} parent=1 // pred_fallthru
      _
    // Predicated region
    $region38: #{tpu_custom_call.1} parent=1 // pred_check
      _
    $region39: #{tpu_custom_call.1} parent=1 // pred_check_branch
      %77 = sbr.rel (0) target = $region41
    $region40: #{tpu_custom_call.1} parent=1 // pred_region
      %78 = dma.done [#allocation6], 512
    $region41: #{tpu_custom_call.1} parent=1 // pred_fallthru
      _
    // Predicated region
    $region42: #{tpu_custom_call.1} parent=1 // pred_check
      _
    $region43: #{tpu_custom_call.1} parent=1 // pred_check_branch
      %80 = sbr.rel (0) target = $region45
    $region44: #{tpu_custom_call.1} parent=1 // pred_region
      %81 = dma.done [#allocation9], 512
    $region45: #{tpu_custom_call.1} parent=1 // pred_fallthru
      _
    %v83 = vld [vmem:[#allocation2] sm:$0xf]
    %v84 = vld [vmem:[#allocation2 + $0x4] sm:$0xf]
    %v85 = vld [vmem:[#allocation5] sm:$0xf]
    %v86 = vld [vmem:[#allocation5 + $0x4] sm:$0xf]
    %v87 = vld [vmem:[#allocation5 + $0x8] sm:$0xf]
    %v88 = vld [vmem:[#allocation5 + $0xc] sm:$0xf]
    %v89 = vld [vmem:[%s2] sm:$0x1]
    %v91 = vlaneseq
    %v92 = vshrl.u32 %v91, 7
    %v93 = vsub.s32 0, %v92
    %v94 = vrot.slane %v89, %v93
    %v98 = vunpack.c.l.b16 %v83
    %v99 = vunpack.c.l.b16 %v84
    %v100 = vpack.c.b16 %v99, %v98
    %v105 = vunpack.c.l.b16 %v85
    %v106 = vunpack.c.l.b16 %v86
    %v107 = vunpack.c.l.b16 %v87
    %v108 = vunpack.c.l.b16 %v88
    %v109 = vpack.c.b16 %v106, %v105
    %v110 = vpack.c.b16 %v108, %v107
    %vm113 = vcmask 261120
    %v115 = vsel %vm113, %v100, 0
    %117 = vmatprep.subr.bf16.mxu0 0
    %118 = vmatpush1.bf16.msra.mxu0 %v109
    %119 = vmatprep.subr.bf16.mxu0 0
    %120 = vmatpush1.bf16.msra.mxu0 %v110
    %121 = vmatprep.subr.bf16.mxu0 0
    %122 = vmatpush1.bf16.msra.mxu0 0
    %123 = vmatprep.subr.bf16.mxu0 0
    %124 = vmatpush1.bf16.msra.mxu0 0
    %125 = vmatprep.subr.bf16.mxu0 0
    %126 = vmatpush1.bf16.msra.mxu0 0
    %127 = vmatprep.subr.bf16.mxu0 0
    %128 = vmatpush1.bf16.msra.mxu0 0
    %129 = vmatprep.subr.bf16.mxu0 0
    %130 = vmatpush1.bf16.msra.mxu0 0
    %131 = vmatprep.subr.bf16.mxu0 0
    %132 = vmatpush1.bf16.msra.mxu0 0
    %133 = vmatprep.subr.bf16.mxu0 0
    %134 = vmatpush1.bf16.msra.mxu0 0
    %135 = vmatprep.subr.bf16.mxu0 0
    %136 = vmatpush1.bf16.msra.mxu0 0
    %137 = vmatprep.subr.bf16.mxu0 0
    %138 = vmatpush1.bf16.msra.mxu0 0
    %139 = vmatprep.subr.bf16.mxu0 0
    %140 = vmatpush1.bf16.msra.mxu0 0
    %141 = vmatprep.subr.bf16.mxu0 0
    %142 = vmatpush1.bf16.msra.mxu0 0
    %143 = vmatprep.subr.bf16.mxu0 0
    %144 = vmatpush1.bf16.msra.mxu0 0
    %145 = vmatprep.subr.bf16.mxu0 0
    %146 = vmatpush1.bf16.msra.mxu0 0
    %147 = vmatprep.subr.bf16.mxu0 0
    %148 = vmatpush1.bf16.msra.mxu0 0
    %149 = vmatprep.mubr.bf16.mxu0 0
    %150 = vmatmul.mubr.bf16.gmra.mrb[0].mxu0 %v115
    %v151 = vpop.f32.mrb[0].mxu0
    %v152 = vadd.f32 %v94, %v151
    %v153 = vpop.f32.mrb[0].mxu0
    %v154 = vpop.f32.mrb[0].mxu0
    %v155 = vadd.f32 %v94, %v154
    %v156 = vpop.f32.mrb[0].mxu0
    %157 = vdwg.mxu0
    %v158 = vmax.f32 %v152, 0.0
    %v159 = vmax.f32 %v155, 0.0
    %v160 = vpack.c.bf16 %v159, %v158
    %v161 = vld [vmem:[#allocation7] sm:$0xf]
    %v162 = vld [vmem:[#allocation7 + $0x4] sm:$0xf]
    %v163 = vld [vmem:[#allocation7 + $0x8] sm:$0xf]
    %v164 = vld [vmem:[#allocation7 + $0xc] sm:$0xf]
    %v165 = vld [vmem:[#allocation7 + $0x10] sm:$0xf]
    %v166 = vld [vmem:[#allocation7 + $0x14] sm:$0xf]
    %v167 = vld [vmem:[#allocation7 + $0x18] sm:$0xf]
    %v168 = vld [vmem:[#allocation7 + $0x1c] sm:$0xf]
    %v169 = vld [vmem:[%s4] sm:$0x1]
    %v171 = vlaneseq
    %v172 = vshrl.u32 %v171, 7
    %v173 = vsub.s32 0, %v172
    %v174 = vrot.slane %v169, %v173
    %v184 = vunpack.c.l.b16 %v161
    %v185 = vunpack.c.l.b16 %v162
    %v186 = vunpack.c.l.b16 %v163
    %v187 = vunpack.c.l.b16 %v164
    %v188 = vunpack.c.l.b16 %v165
    %v189 = vunpack.c.l.b16 %v166
    %v190 = vunpack.c.l.b16 %v167
    %v191 = vunpack.c.l.b16 %v168
    %v192 = vpack.c.b16 %v185, %v184
    %v193 = vpack.c.b16 %v187, %v186
    %v194 = vpack.c.b16 %v189, %v188
    %v195 = vpack.c.b16 %v191, %v190
    %vm200 = vcmask 523264
    %v202 = vsel %vm200, %v160, 0
    %204 = vmatprep.subr.bf16.mxu0 0
    %205 = vmatpush1.bf16.msra.mxu0 %v192
    %206 = vmatprep.subr.bf16.mxu0 0
    %207 = vmatpush1.bf16.msra.mxu0 %v193
    %208 = vmatprep.subr.bf16.mxu0 0
    %209 = vmatpush1.bf16.msra.mxu0 %v194
    %210 = vmatprep.subr.bf16.mxu0 0
    %211 = vmatpush1.bf16.msra.mxu0 %v195
    %212 = vmatprep.subr.bf16.mxu0 0
    %213 = vmatpush1.bf16.msra.mxu0 0
    %214 = vmatprep.subr.bf16.mxu0 0
    %215 = vmatpush1.bf16.msra.mxu0 0
    %216 = vmatprep.subr.bf16.mxu0 0
    %217 = vmatpush1.bf16.msra.mxu0 0
    %218 = vmatprep.subr.bf16.mxu0 0
    %219 = vmatpush1.bf16.msra.mxu0 0
    %220 = vmatprep.subr.bf16.mxu0 0
    %221 = vmatpush1.bf16.msra.mxu0 0
    %222 = vmatprep.subr.bf16.mxu0 0
    %223 = vmatpush1.bf16.msra.mxu0 0
    %224 = vmatprep.subr.bf16.mxu0 0
    %225 = vmatpush1.bf16.msra.mxu0 0
    %226 = vmatprep.subr.bf16.mxu0 0
    %227 = vmatpush1.bf16.msra.mxu0 0
    %228 = vmatprep.subr.bf16.mxu0 0
    %229 = vmatpush1.bf16.msra.mxu0 0
    %230 = vmatprep.subr.bf16.mxu0 0
    %231 = vmatpush1.bf16.msra.mxu0 0
    %232 = vmatprep.subr.bf16.mxu0 0
    %233 = vmatpush1.bf16.msra.mxu0 0
    %234 = vmatprep.subr.bf16.mxu0 0
    %235 = vmatpush1.bf16.msra.mxu0 0
    %236 = vmatprep.mubr.bf16.mxu0 0
    %237 = vmatmul.mubr.bf16.gmra.mrb[0].mxu0 %v202
    %v238 = vpop.f32.mrb[0].mxu0
    %v239 = vadd.f32 %v174, %v238
    %v240 = vpop.f32.mrb[0].mxu0
    %v241 = vpop.f32.mrb[0].mxu0
    %v242 = vadd.f32 %v174, %v241
    %v243 = vpop.f32.mrb[0].mxu0
    %244 = vdwg.mxu0
    %v245 = vmax.f32 %v239, 0.0
    %v246 = vmax.f32 %v242, 0.0
    %v247 = vpack.c.bf16 %v246, %v245
    %v248 = vld [vmem:[#allocation8] sm:$0xf]
    %v249 = vld [vmem:[#allocation8 + $0x4] sm:$0xf]
    %v250 = vld [vmem:[#allocation8 + $0x8] sm:$0xf]
    %v251 = vld [vmem:[#allocation8 + $0xc] sm:$0xf]
    %v252 = vld [vmem:[#allocation8 + $0x10] sm:$0xf]
    %v253 = vld [vmem:[#allocation8 + $0x14] sm:$0xf]
    %v254 = vld [vmem:[#allocation8 + $0x18] sm:$0xf]
    %v255 = vld [vmem:[#allocation8 + $0x1c] sm:$0xf]
    %v256 = vld [vmem:[%s6] sm:$0x1]
    %v258 = vlaneseq
    %v259 = vshrl.u32 %v258, 7
    %v260 = vsub.s32 0, %v259
    %v261 = vrot.slane %v256, %v260
    %v271 = vunpack.c.l.b16 %v248
    %v272 = vunpack.c.l.b16 %v249
    %v273 = vunpack.c.l.b16 %v250
    %v274 = vunpack.c.l.b16 %v251
    %v275 = vunpack.c.l.b16 %v252
    %v276 = vunpack.c.l.b16 %v253
    %v277 = vunpack.c.l.b16 %v254
    %v278 = vunpack.c.l.b16 %v255
    %v279 = vpack.c.b16 %v272, %v271
    %v280 = vpack.c.b16 %v274, %v273
    %v281 = vpack.c.b16 %v276, %v275
    %v282 = vpack.c.b16 %v278, %v277
    %v288 = vsel %vm200, %v247, 0
    %290 = vmatprep.subr.bf16.mxu0 0
    %291 = vmatpush1.bf16.msra.mxu0 %v279
    %292 = vmatprep.subr.bf16.mxu0 0
    %293 = vmatpush1.bf16.msra.mxu0 %v280
    %294 = vmatprep.subr.bf16.mxu0 0
    %295 = vmatpush1.bf16.msra.mxu0 %v281
    %296 = vmatprep.subr.bf16.mxu0 0
    %297 = vmatpush1.bf16.msra.mxu0 %v282
    %298 = vmatprep.subr.bf16.mxu0 0
    %299 = vmatpush1.bf16.msra.mxu0 0
    %300 = vmatprep.subr.bf16.mxu0 0
    %301 = vmatpush1.bf16.msra.mxu0 0
    %302 = vmatprep.subr.bf16.mxu0 0
    %303 = vmatpush1.bf16.msra.mxu0 0
    %304 = vmatprep.subr.bf16.mxu0 0
    %305 = vmatpush1.bf16.msra.mxu0 0
    %306 = vmatprep.subr.bf16.mxu0 0
    %307 = vmatpush1.bf16.msra.mxu0 0
    %308 = vmatprep.subr.bf16.mxu0 0
    %309 = vmatpush1.bf16.msra.mxu0 0
    %310 = vmatprep.subr.bf16.mxu0 0
    %311 = vmatpush1.bf16.msra.mxu0 0
    %312 = vmatprep.subr.bf16.mxu0 0
    %313 = vmatpush1.bf16.msra.mxu0 0
    %314 = vmatprep.subr.bf16.mxu0 0
    %315 = vmatpush1.bf16.msra.mxu0 0
    %316 = vmatprep.subr.bf16.mxu0 0
    %317 = vmatpush1.bf16.msra.mxu0 0
    %318 = vmatprep.subr.bf16.mxu0 0
    %319 = vmatpush1.bf16.msra.mxu0 0
    %320 = vmatprep.subr.bf16.mxu0 0
    %321 = vmatpush1.bf16.msra.mxu0 0
    %322 = vmatprep.mubr.bf16.mxu0 0
    %323 = vmatmul.mubr.bf16.gmra.mrb[0].mxu0 %v288
    %v324 = vpop.f32.mrb[0].mxu0
    %v325 = vadd.f32 %v261, %v324
    %v326 = vpop.f32.mrb[0].mxu0
    %v327 = vpop.f32.mrb[0].mxu0
    %v328 = vadd.f32 %v261, %v327
    %v329 = vpop.f32.mrb[0].mxu0
    %330 = vdwg.mxu0
    %331 = vst [vmem:[#allocation10] sm:$0xff] %v325
    %332 = vst [vmem:[#allocation10 + $0x8] sm:$0xff] %v328
    // Predicated region
    $region46: #{tpu_custom_call.1} parent=1 // pred_check
      _
    $region47: #{tpu_custom_call.1} parent=1 // pred_check_branch
      %334 = sbr.rel (0) target = $region49
    $region48: #{tpu_custom_call.1} parent=1 // pred_region
      %s336 = ssub.s32 256, 256
      %337 = vsyncadd [#allocation4], %s336
      %s338 = sshll.u32 [#allocation10], 4
      %s339 = int_to_ptr.vmem [resolvable:$true] %s338
      %344 = dma.vmem_to_hbm [thread:$0]  %s339, 256, %s7, [#allocation4], 128, 128, 8
    $region49: #{tpu_custom_call.1} parent=1 // pred_fallthru
      _
    // Predicated region
    $region50: #{tpu_custom_call.1} parent=1 // pred_check
      _
    $region51: #{tpu_custom_call.1} parent=1 // pred_check_branch
      %346 = sbr.rel (0) target = $region53
    $region52: #{tpu_custom_call.1} parent=1 // pred_region
      %347 = dma.done [#allocation4], 256
    $region53: #{tpu_custom_call.1} parent=1 // pred_fallthru
      _
    %348 = vsyncpa [#allocation3], 1
    %349 = vsyncpa [#allocation6], 1
    %350 = vsyncpa [#allocation9], 1
    %351 = vsyncpa [#allocation4], 1

</llo_original>
